<compile_context>
chip_gen: v7x
topology: tpu7x:2x2x1
jax: 0.10.0
libtpu: 0.0.40
codegen_flags: <defaults>
</compile_context>

<pallas_src>
import functools

import jax
import jax.numpy as jnp
from jax.experimental import pallas as pl
from jax.experimental.pallas import tpu as pltpu

VMEM_SPEC = pl.BlockSpec(memory_space=pltpu.MemorySpace.VMEM)


# --------------------------------------------------------------------------------------
# Shared in-kernel helpers
# --------------------------------------------------------------------------------------
def _encoder_and_heads(text_bt_ref, word_emb_ref, enc_w_ref, enc_b_ref,
                       head_w_ref, head_b_ref, *, min_dur, max_dur):
    """Embedding lookup + encoder Linear/tanh + masked duration & pitch heads.

    Returns (enc (B,T,D), mask (B,T), log_durs (B,T), durs (B,T), pitch (B,T)).
    """
    B, T = text_bt_ref.shape
    V, D = word_emb_ref.shape
    ids = text_bt_ref[...]                                                    # (B, T) i32
    mask = (ids != 0).astype(jnp.float32)                                     # (B, T)
    # word-embedding lookup folded in as an exact one-hot batched matmul: removes the
    # XLA-level gather dispatch and the (B, T, D) HBM intermediate.
    onehot = (ids[:, :, None]
              == jax.lax.broadcasted_iota(jnp.int32, (B, T, V), 2)).astype(jnp.float32)
    emb = jnp.einsum('btv,bvd->btd', onehot,
                     jnp.broadcast_to(word_emb_ref[...], (B, V, D)),
                     preferred_element_type=jnp.float32)                      # (B, T, D)
    h = jnp.einsum('btd,bde->bte', emb,
                   jnp.broadcast_to(enc_w_ref[...], (B, D, D)),
                   preferred_element_type=jnp.float32) + enc_b_ref[...][None, :, :]
    enc = jnp.tanh(h) * mask[:, :, None]                                      # (B, T, D)
    # duration / pitch heads as lane reductions (keeps the (B, T) orientation used by
    # the conv scratch rows and the packed output); masked like the NeMo predictors.
    logd = (jnp.sum(enc * head_w_ref[0:1, :][None, :, :], axis=-1)
            + head_b_ref[0, 0]) * mask
    pitch = (jnp.sum(enc * head_w_ref[1:2, :][None, :, :], axis=-1)
             + head_b_ref[1, 0]) * mask
    # log_to_duration: clamp(exp(log_dur) - 1, min, max) * mask
    durs = jnp.clip(jnp.exp(logd) - 1.0, min_dur, max_dur) * mask
    return enc, mask, logd, durs, pitch


def _conv1d_add(base, x, w_ref, b_ref, buf_ref):
    """'same' Conv1d(1, D, K) of the scalar track x (B, T) fused with the residual add.

    x is staged once into a zero-padded VMEM scratch row; each tap is a cheap static
    lane-offset slice load (O(T) per tap; replaces the previous O(T^2) shift-matrix
    MXU matmuls).  Odd K only.
    """
    K = w_ref.shape[0]
    B, T = x.shape
    P = (buf_ref.shape[1] - T) // 2          # scratch padding (== (K - 1) // 2)
    pad = (K - 1) // 2
    buf_ref[...] = jnp.zeros_like(buf_ref)
    buf_ref[:, P:P + T] = x
    acc = base + b_ref[...][None, :, :]
    for k in range(K):
        o = k - pad
        xs = buf_ref[:, P + o:P + o + T]                                      # (B, T)
        acc = acc + xs[:, :, None] * w_ref[k:k + 1, :][None, :, :]
    return acc


def _convs_and_energy(enc, mask, pitch_in, energy_in, head_w_ref, head_b_ref,
                      pw_ref, pb_ref, ew_ref, eb_ref, pitch_buf, energy_buf, *,
                      use_energy_target):
    """pitch conv-add -> masked energy head -> energy conv-add; stays in vregs/VMEM."""
    enc2 = _conv1d_add(enc, pitch_in, pw_ref, pb_ref, pitch_buf)
    energy_pred = (jnp.sum(enc2 * head_w_ref[2:3, :][None, :, :], axis=-1)
                   + head_b_ref[2, 0]) * mask
    e_in = energy_in if use_energy_target else energy_pred
    enc3 = _conv1d_add(enc2, e_in, ew_ref, eb_ref, energy_buf)
    return enc3, energy_pred


# --------------------------------------------------------------------------------------
# Kernel A: encoder + heads (targets path; single packed head output)
# --------------------------------------------------------------------------------------
def _encoder_kernel(text_bt_ref, word_emb_ref, enc_w_ref, enc_b_ref,
                    head_w_ref, head_b_ref, enc_out_ref, packed_ref, *, min_dur, max_dur):
    enc, _, logd, durs, pitch = _encoder_and_heads(
        text_bt_ref, word_emb_ref, enc_w_ref, enc_b_ref, head_w_ref, head_b_ref,
        min_dur=min_dur, max_dur=max_dur)
    enc_out_ref[...] = enc
    # one packed output (single DMA stream) instead of three (N, 1) masked stores.
    packed_ref[0] = logd
    packed_ref[1] = durs
    packed_ref[2] = pitch


# --------------------------------------------------------------------------------------
# Kernel B: pitch conv-add + energy head + energy conv-add (targets path)
# --------------------------------------------------------------------------------------
def _pitch_energy_kernel(text_bt_ref, enc_ref, pitch_in_ref, energy_in_ref,
                         head_w_ref, head_b_ref, pw_ref, pb_ref, ew_ref, eb_ref,
                         enc_out_ref, energy_pred_ref, pitch_buf, energy_buf, *,
                         use_energy_target):
    mask = (text_bt_ref[...] != 0).astype(jnp.float32)
    enc3, energy_pred = _convs_and_energy(
        enc_ref[...], mask, pitch_in_ref[...], energy_in_ref[...],
        head_w_ref, head_b_ref, pw_ref, pb_ref, ew_ref, eb_ref,
        pitch_buf, energy_buf, use_energy_target=use_energy_target)
    enc_out_ref[...] = enc3
    energy_pred_ref[...] = energy_pred


# --------------------------------------------------------------------------------------
# Fused kernel (inference-style path: pitch=None, energy=None): encoder + heads +
# log_to_duration + pitch conv-add + energy head + energy conv-add in ONE pallas_call.
# --------------------------------------------------------------------------------------
def _fused_encoder_kernel(text_bt_ref, word_emb_ref, enc_w_ref, enc_b_ref,
                          head_w_ref, head_b_ref, pw_ref, pb_ref, ew_ref, eb_ref,
                          enc_out_ref, packed_ref, pitch_buf, energy_buf, *,
                          min_dur, max_dur):
    enc, mask, logd, durs, pitch = _encoder_and_heads(
        text_bt_ref, word_emb_ref, enc_w_ref, enc_b_ref, head_w_ref, head_b_ref,
        min_dur=min_dur, max_dur=max_dur)
    enc3, energy_pred = _convs_and_energy(
        enc, mask, pitch, None, head_w_ref, head_b_ref, pw_ref, pb_ref, ew_ref, eb_ref,
        pitch_buf, energy_buf, use_energy_target=False)
    enc_out_ref[...] = enc3
    packed_ref[0] = logd
    packed_ref[1] = durs
    packed_ref[2] = pitch
    packed_ref[3] = energy_pred


# --------------------------------------------------------------------------------------
# Kernel C: regulate_len gather + decoder + projection, gridded over frame blocks.
# Fully transposed (frames on lanes): batch-stacked bf16 MXU matmuls, lane-dense output.
# --------------------------------------------------------------------------------------
def _decoder_kernel(starts_ref, ends_ref, enc_t_ref, dec_wt_ref, dec_b_ref,
                    proj_wt_ref, proj_b_ref, o_ref, x_buf, *, f_block, bf16_tanh):
    Bsz, D, T = enc_t_ref.shape
    fb = f_block
    f0 = pl.program_id(0) * fb
    fidx = jax.lax.broadcasted_iota(jnp.int32, (T, fb), 1) + f0               # (T, fb)
    fmasks = []
    for b in range(Bsz):                       # batch is small & static; unrolled
        starts_b = starts_ref[b]                                              # (T, 1) i32
        ends_b = ends_ref[b]                                                  # (T, 1) i32
        # regulate_len selector built in-kernel from the duration cumsum:
        #   sel[t, f] = starts[t] <= f < ends[t]   (all-zero column => padding frame)
        sel = ((fidx >= starts_b) & (fidx < ends_b)).astype(jnp.bfloat16)     # (T, fb)
        # gather-by-matmul in bf16 (exact row select); stacked along lanes so the
        # decoder / projection matmuls below run once over all batches.
        x_b = jnp.dot(enc_t_ref[b], sel, preferred_element_type=jnp.float32)  # (D, fb)
        x_buf[:, b * fb:(b + 1) * fb] = x_b.astype(jnp.bfloat16)
        fmasks.append(fidx[0:1, :] < ends_b[T - 1:T, :])                      # (1, fb)
    x_all = x_buf[...]                                                        # (D, B*fb)
    h = (jnp.dot(dec_wt_ref[...], x_all, preferred_element_type=jnp.float32)
         + dec_b_ref[...])                                                    # (D, B*fb)
    if bf16_tanh:
        dec_t = jnp.tanh(h.astype(jnp.bfloat16))     # bf16 EUP path (v6e / v7x)
    else:
        dec_t = jnp.tanh(h).astype(jnp.bfloat16)     # f32 EUP (v5e has no bf16 EUP)
    sp = (jnp.dot(proj_wt_ref[...], dec_t, preferred_element_type=jnp.float32)
          + proj_b_ref[...])                                                  # (n_mel, B*fb)
    for b in range(Bsz):
        # zero frames beyond dec_lens[b] instead of leaving the tanh/proj bias residue.
        o_ref[b] = jnp.where(fmasks[b], sp[:, b * fb:(b + 1) * fb], 0.0)


# --------------------------------------------------------------------------------------
# Plain-JAX glue (data-dependent bucketed gather)
# --------------------------------------------------------------------------------------
def average_features(feat, durs):
    """feat: (B, n_formants, n_frames), durs: (B, T) float -> (B, n_formants, T)."""
    # TODO(synk): cumsum + data-dependent bucketed gather has no clean Pallas tiling at
    # these sizes; kept in JAX (matches the PyTorch reference exactly, incl. truncation).
    durs_cums_ends = jnp.cumsum(durs, axis=1).astype(jnp.int32)
    durs_cums_starts = jnp.pad(durs_cums_ends[:, :-1], ((0, 0), (1, 0)))
    nonzero_cums = jnp.pad(
        jnp.cumsum((feat != 0.0).astype(jnp.float32), axis=2), ((0, 0), (0, 0), (1, 0)))
    cums = jnp.pad(jnp.cumsum(feat, axis=2), ((0, 0), (0, 0), (1, 0)))
    bs, l = durs_cums_ends.shape
    nf = feat.shape[1]
    dcs = jnp.broadcast_to(durs_cums_starts[:, None, :], (bs, nf, l))
    dce = jnp.broadcast_to(durs_cums_ends[:, None, :], (bs, nf, l))
    sums = (jnp.take_along_axis(cums, dce, axis=2)
            - jnp.take_along_axis(cums, dcs, axis=2)).astype(jnp.float32)
    nelems = (jnp.take_along_axis(nonzero_cums, dce, axis=2)
              - jnp.take_along_axis(nonzero_cums, dcs, axis=2)).astype(jnp.float32)
    return jnp.where(nelems == 0.0, nelems, sums / nelems)


# --------------------------------------------------------------------------------------
# FastPitch module (synthetic deterministic stand-in weights for encoder/decoder/heads)
# --------------------------------------------------------------------------------------
class FastPitchPallas:
    def __init__(self, key, *, vocab_size=40, symbols_embedding_dim=32, n_mel_channels=16,
                 seq_len=8, pitch_embedding_kernel_size=3, energy_embedding_kernel_size=3,
                 min_token_duration=0, max_token_duration=75, use_log_energy=True):
        assert pitch_embedding_kernel_size % 2 == 1 and energy_embedding_kernel_size % 2 == 1, \
            "'same'-padded 1-channel Conv1d path assumes odd kernel sizes"
        D = symbols_embedding_dim
        self.d_model = D
        self.n_mel = n_mel_channels
        self.min_token_duration = float(min_token_duration)
        self.max_token_duration = float(max_token_duration)
        self.use_log_energy = use_log_energy
        self.pitch_pad = (pitch_embedding_kernel_size - 1) // 2
        self.energy_pad = (energy_embedding_kernel_size - 1) // 2

        # ---- per-generation tuning for the decoder stage -------------------------------
        kind = ""
        try:
            kind = jax.devices()[0].device_kind.lower()
        except Exception:
            pass
        n_tc = 2 if ("v7" in kind or "v4" in kind) else 1        # TensorCores per chip
        self.bf16_tanh = ("v6" in kind) or ("v7" in kind)        # bf16 EUP available
        quantum = 128 * n_tc
        # static regulate_len bound (pace==1); one maximal frame block per TensorCore.
        self.max_frames = ((seq_len * max_token_duration + quantum - 1) // quantum) * quantum
        self.n_blocks = n_tc
        self.f_block = self.max_frames // self.n_blocks

        ks = jax.random.split(key, 13)

        def init(k, shape, scale=0.1):
            return (scale * jax.random.normal(k, shape)).astype(jnp.float32)

        # stand-in encoder: embedding + Linear(D, D) + tanh
        self.word_emb = init(ks[0], (vocab_size, D), 0.5)
        self.enc_w, self.enc_b = init(ks[1], (D, D)), init(ks[2], (1, D))
        # predictor heads packed as rows: 0=duration, 1=pitch, 2=energy
        self.head_w, self.head_b = init(ks[3], (3, D)), init(ks[4], (3, 1))
        # pitch_emb / energy_emb Conv1d(1, D, K, padding=(K-1)//2); weight stored as (K, D)
        self.pitch_emb_w = init(ks[5], (pitch_embedding_kernel_size, D))
        self.pitch_emb_b = init(ks[6], (1, D))
        self.energy_emb_w = init(ks[7], (energy_embedding_kernel_size, D))
        self.energy_emb_b = init(ks[8], (1, D))
        # stand-in decoder Linear(D, D)+tanh and proj Linear(D, n_mel), stored transposed
        # (kernel C keeps frames on lanes); bf16 MXU operands, f32 biases.
        self.dec_wt = init(ks[9], (D, D)).astype(jnp.bfloat16)                  # dec_w.T
        self.dec_b = init(ks[10], (D, 1))
        self.proj_wt = init(ks[11], (n_mel_channels, D)).astype(jnp.bfloat16)   # proj_w.T
        self.proj_b = init(ks[12], (n_mel_channels, 1))

    def forward(self, *, text, pitch=None, energy=None, pace=1.0):
        B, T = text.shape
        D, n_mel = self.d_model, self.n_mel
        text_bt = text.astype(jnp.int32)
        conv_scratch = [
            pltpu.VMEM((B, T + 2 * self.pitch_pad), jnp.float32),
            pltpu.VMEM((B, T + 2 * self.energy_pad), jnp.float32),
        ]

        pitch_out = pitch            # reference returns the (averaged) pitch target or None
        energy_tgt_out = None

        if pitch is None and energy is None:
            # ---- fully fused path: one kernel, one HBM round trip for enc --------------
            enc_final, packed = pl.pallas_call(
                functools.partial(_fused_encoder_kernel,
                                  min_dur=self.min_token_duration,
                                  max_dur=self.max_token_duration),
                out_shape=(jax.ShapeDtypeStruct((B, T, D), jnp.float32),
                           jax.ShapeDtypeStruct((4, B, T), jnp.float32)),
                in_specs=[VMEM_SPEC] * 10,
                out_specs=(VMEM_SPEC, VMEM_SPEC),
                scratch_shapes=conv_scratch,
            )(text_bt, self.word_emb, self.enc_w, self.enc_b, self.head_w, self.head_b,
              self.pitch_emb_w, self.pitch_emb_b, self.energy_emb_w, self.energy_emb_b)
            log_durs_predicted = packed[0]
            durs_predicted = packed[1]
            pitch_predicted = packed[2]
            energy_pred = packed[3]
        else:
            # ---- stage A: encoder + heads (packed single output) -----------------------
            enc_out, packed = pl.pallas_call(
                functools.partial(_encoder_kernel,
                                  min_dur=self.min_token_duration,
                                  max_dur=self.max_token_duration),
                out_shape=(jax.ShapeDtypeStruct((B, T, D), jnp.float32),
                           jax.ShapeDtypeStruct((3, B, T), jnp.float32)),
                in_specs=[VMEM_SPEC] * 6,
                out_specs=(VMEM_SPEC, VMEM_SPEC),
            )(text_bt, self.word_emb, self.enc_w, self.enc_b, self.head_w, self.head_b)
            log_durs_predicted = packed[0]
            durs_predicted = packed[1]
            pitch_predicted = packed[2]

            # ---- frame-level target averaging (data-dependent gather; JAX glue) --------
            if pitch is not None:
                pitch_avg = average_features(pitch[:, None, :], durs_predicted)[:, 0, :]
                pitch_in = pitch_avg
                pitch_out = pitch_avg
            else:
                pitch_in = pitch_predicted
            if energy is not None:
                energy_tgt = average_features(energy[:, None, :], durs_predicted)
                if self.use_log_energy:
                    energy_tgt = jnp.log(1.0 + energy_tgt)
                energy_in = energy_tgt[:, 0, :]
                energy_tgt_out = energy_in
                use_energy_target = True
            else:
                energy_in = jnp.zeros((B, T), jnp.float32)
                use_energy_target = False

            # ---- stage B: pitch conv-add + energy head + energy conv-add (fused) -------
            enc_final, energy_pred = pl.pallas_call(
                functools.partial(_pitch_energy_kernel, use_energy_target=use_energy_target),
                out_shape=(jax.ShapeDtypeStruct((B, T, D), jnp.float32),
                           jax.ShapeDtypeStruct((B, T), jnp.float32)),
                in_specs=[VMEM_SPEC] * 10,
                out_specs=(VMEM_SPEC, VMEM_SPEC),
                scratch_shapes=conv_scratch,
            )(text_bt, enc_out, pitch_in, energy_in, self.head_w, self.head_b,
              self.pitch_emb_w, self.pitch_emb_b, self.energy_emb_w, self.energy_emb_b)

        # ---- regulate_len bookkeeping (scalar cumsum; the gather itself is in kernel C) -
        reps = jnp.floor(durs_predicted / pace + 0.5).astype(jnp.int32)       # (B, T)
        ends = jnp.cumsum(reps, axis=1)                                       # (B, T)
        starts = ends - reps
        dec_lens = ends[:, -1]

        # frames-on-lanes layout for the decoder stage; bf16 halves HBM traffic and the
        # gather matmul is an exact row select, so numerics are unchanged.
        enc_t = jnp.transpose(enc_final, (0, 2, 1)).astype(jnp.bfloat16)      # (B, D, T)
        # NOTE: could be emitted as (B, D, T) directly by the encoder kernels (in-kernel
        # transpose) to drop this single XLA op; kept in JAX for lowering robustness.

        fb = self.f_block
        spect = pl.pallas_call(
            functools.partial(_decoder_kernel, f_block=fb, bf16_tanh=self.bf16_tanh),
            out_shape=jax.ShapeDtypeStruct((B, n_mel, self.max_frames), jnp.float32),
            grid=(self.n_blocks,),
            in_specs=[
                pl.BlockSpec((B, T, 1), lambda f: (0, 0, 0)),     # duration-cumsum starts
                pl.BlockSpec((B, T, 1), lambda f: (0, 0, 0)),     # duration-cumsum ends
                pl.BlockSpec((B, D, T), lambda f: (0, 0, 0)),     # enc (transposed, bf16)
                pl.BlockSpec((D, D), lambda f: (0, 0)),           # dec_w.T (bf16)
                pl.BlockSpec((D, 1), lambda f: (0, 0)),
                pl.BlockSpec((n_mel, D), lambda f: (0, 0)),       # proj_w.T (bf16)
                pl.BlockSpec((n_mel, 1), lambda f: (0, 0)),
            ],
            out_specs=pl.BlockSpec((B, n_mel, fb), lambda f: (0, 0, f)),
            scratch_shapes=[pltpu.VMEM((D, B * fb), jnp.bfloat16)],
            compiler_params=pltpu.CompilerParams(dimension_semantics=("parallel",)),
        )(starts[..., None], ends[..., None], enc_t,
          self.dec_wt, self.dec_b, self.proj_wt, self.proj_b)
        # spect is (B, n_mel, frames) with lane-dense stores; frames >= dec_lens[b] are 0.

        attn_soft = attn_logprob = attn_hard = attn_hard_dur = None    # learn_alignment=False
        return (spect, dec_lens, durs_predicted, log_durs_predicted, pitch_predicted,
                attn_soft, attn_logprob, attn_hard, attn_hard_dur,
                pitch_out, energy_pred, energy_tgt_out)


# --------------------------------------------------------------------------------------
if __name__ == "__main__":
    key = jax.random.PRNGKey(0)
    k_model, k_text, k_pitch, k_energy = jax.random.split(key, 4)

    B, T = 2, 8
    model = FastPitchPallas(
        k_model,
        vocab_size=40,
        symbols_embedding_dim=32,
        n_mel_channels=16,
        seq_len=T,
        pitch_embedding_kernel_size=3,
        energy_embedding_kernel_size=3,
    )

    text = jax.random.randint(k_text, (B, T), 0, 40, dtype=jnp.int32)
    n_frames = model.max_frames   # frame-level targets, long enough for any duration cumsum
    pitch = jax.random.normal(k_pitch, (B, n_frames), dtype=jnp.float32)
    energy = jnp.abs(jax.random.normal(k_energy, (B, n_frames), dtype=jnp.float32))

    # training-style path (frame-level targets -> stage A / average_features / stage B / C)
    outs_train = model.forward(text=text, pitch=pitch, energy=energy, pace=1.0)
    # inference-style path (no targets -> single fused encoder kernel + C)
    outs_infer = model.forward(text=text, pace=1.0)

    jax.block_until_ready([o for o in list(outs_train) + list(outs_infer) if o is not None])
    print("KERNEL_OK")
</pallas_src>

<mosaic_0001>
module attributes {stable_mosaic.version = 11 : i64} {
  func.func @_encoder_kernel(%arg0: memref<2x8xi32, #tpu.memory_space<vmem>>, %arg1: memref<40x32xf32, #tpu.memory_space<vmem>>, %arg2: memref<32x32xf32, #tpu.memory_space<vmem>>, %arg3: memref<1x32xf32, #tpu.memory_space<vmem>>, %arg4: memref<3x32xf32, #tpu.memory_space<vmem>>, %arg5: memref<3x1xf32, #tpu.memory_space<vmem>>, %arg6: memref<2x8x32xf32, #tpu.memory_space<vmem>>, %arg7: memref<3x2x8xf32, #tpu.memory_space<vmem>>) attributes {dimension_semantics = [], scalar_prefetch = 0 : i64, scratch_operands = 0 : i64, tpu.core_type = #tpu.core_type<tc>} {
    %c0 = arith.constant 0 : index
    %c0_0 = arith.constant 0 : index
    %0 = vector.load %arg0[%c0, %c0_0] : memref<2x8xi32, #tpu.memory_space<vmem>>, vector<2x8xi32>
    %c0_i32 = arith.constant 0 : i32
    %1 = vector.broadcast %c0_i32 : i32 to vector<2x8xi32>
    %2 = arith.cmpi ne, %0, %1 : vector<2x8xi32>
    %3 = arith.extui %2 : vector<2x8xi1> to vector<2x8xi32>
    %4 = arith.sitofp %3 : vector<2x8xi32> to vector<2x8xf32>
    %5 = vector.shape_cast %0 : vector<2x8xi32> to vector<2x8x1xi32>
    %6 = tpu.iota {dimensions = array<i32: 2>} : vector<2x8x40xi32>
    %7 = vector.broadcast %5 : vector<2x8x1xi32> to vector<2x8x40xi32>
    %8 = arith.cmpi eq, %7, %6 : vector<2x8x40xi32>
    %9 = arith.extui %8 : vector<2x8x40xi1> to vector<2x8x40xi32>
    %10 = arith.sitofp %9 : vector<2x8x40xi32> to vector<2x8x40xf32>
    %c0_1 = arith.constant 0 : index
    %c0_2 = arith.constant 0 : index
    %11 = vector.load %arg1[%c0_1, %c0_2] : memref<40x32xf32, #tpu.memory_space<vmem>>, vector<40x32xf32>
    %12 = vector.shape_cast %11 : vector<40x32xf32> to vector<1x40x32xf32>
    %13 = vector.broadcast %12 : vector<1x40x32xf32> to vector<2x40x32xf32>
    "tpu.trace_start"() <{level = 10 : i32, message = "btv,bvd->btd"}> : () -> ()
    %cst = arith.constant dense<0.000000e+00> : vector<2x8x32xf32>
    %14 = tpu.matmul %10, %13, %cst {dimension_numbers = #tpu.dot_dimension_numbers<[2], [1], [1], [2], [0, 0, 0, 1, 1, 2], [0], [0]>} : vector<2x8x40xf32>, vector<2x40x32xf32>, vector<2x8x32xf32> -> vector<2x8x32xf32>
    "tpu.trace_stop"() : () -> ()
    %c0_3 = arith.constant 0 : index
    %c0_4 = arith.constant 0 : index
    %15 = vector.load %arg2[%c0_3, %c0_4] : memref<32x32xf32, #tpu.memory_space<vmem>>, vector<32x32xf32>
    %16 = vector.shape_cast %15 : vector<32x32xf32> to vector<1x32x32xf32>
    %17 = vector.broadcast %16 : vector<1x32x32xf32> to vector<2x32x32xf32>
    "tpu.trace_start"() <{level = 10 : i32, message = "btd,bde->bte"}> : () -> ()
    %cst_5 = arith.constant dense<0.000000e+00> : vector<2x8x32xf32>
    %18 = tpu.matmul %14, %17, %cst_5 {dimension_numbers = #tpu.dot_dimension_numbers<[2], [1], [1], [2], [0, 0, 0, 1, 1, 2], [0], [0]>} : vector<2x8x32xf32>, vector<2x32x32xf32>, vector<2x8x32xf32> -> vector<2x8x32xf32>
    "tpu.trace_stop"() : () -> ()
    %c0_6 = arith.constant 0 : index
    %c0_7 = arith.constant 0 : index
    %19 = vector.load %arg3[%c0_6, %c0_7] : memref<1x32xf32, #tpu.memory_space<vmem>>, vector<1x32xf32>
    %20 = vector.shape_cast %19 : vector<1x32xf32> to vector<1x1x32xf32>
    %21 = vector.broadcast %20 : vector<1x1x32xf32> to vector<2x8x32xf32>
    %22 = arith.addf %18, %21 : vector<2x8x32xf32>
    %23 = math.tanh %22 : vector<2x8x32xf32>
    %24 = vector.shape_cast %4 : vector<2x8xf32> to vector<2x8x1xf32>
    %25 = vector.broadcast %24 : vector<2x8x1xf32> to vector<2x8x32xf32>
    %26 = arith.mulf %23, %25 : vector<2x8x32xf32>
    %c0_8 = arith.constant 0 : index
    %c0_9 = arith.constant 0 : index
    %27 = vector.load %arg4[%c0_8, %c0_9] : memref<3x32xf32, #tpu.memory_space<vmem>>, vector<1x32xf32>
    %28 = vector.shape_cast %27 : vector<1x32xf32> to vector<1x1x32xf32>
    %29 = vector.broadcast %28 : vector<1x1x32xf32> to vector<2x8x32xf32>
    %30 = arith.mulf %26, %29 : vector<2x8x32xf32>
    %cst_10 = arith.constant dense<0.000000e+00> : vector<2x8xf32>
    %31 = vector.multi_reduction <add>, %30, %cst_10 [2] : vector<2x8x32xf32> to vector<2x8xf32>
    %c0_11 = arith.constant 0 : index
    %c0_12 = arith.constant 0 : index
    %32 = vector.load %arg5[%c0_11, %c0_12] : memref<3x1xf32, #tpu.memory_space<vmem>>, vector<1x1xf32>
    %33 = vector.extract %32[0, 0] : f32 from vector<1x1xf32>
    %34 = vector.broadcast %33 : f32 to vector<2x8xf32>
    %35 = arith.addf %31, %34 : vector<2x8xf32>
    %36 = arith.mulf %35, %4 : vector<2x8xf32>
    %c1 = arith.constant 1 : index
    %c0_13 = arith.constant 0 : index
    %37 = vector.load %arg4[%c1, %c0_13] : memref<3x32xf32, #tpu.memory_space<vmem>>, vector<1x32xf32>
    %38 = vector.shape_cast %37 : vector<1x32xf32> to vector<1x1x32xf32>
    %39 = vector.broadcast %38 : vector<1x1x32xf32> to vector<2x8x32xf32>
    %40 = arith.mulf %26, %39 : vector<2x8x32xf32>
    %cst_14 = arith.constant dense<0.000000e+00> : vector<2x8xf32>
    %41 = vector.multi_reduction <add>, %40, %cst_14 [2] : vector<2x8x32xf32> to vector<2x8xf32>
    %c1_15 = arith.constant 1 : index
    %c0_16 = arith.constant 0 : index
    %42 = vector.load %arg5[%c1_15, %c0_16] : memref<3x1xf32, #tpu.memory_space<vmem>>, vector<1x1xf32>
    %43 = vector.extract %42[0, 0] : f32 from vector<1x1xf32>
    %44 = vector.broadcast %43 : f32 to vector<2x8xf32>
    %45 = arith.addf %41, %44 : vector<2x8xf32>
    %46 = arith.mulf %45, %4 : vector<2x8xf32>
    %47 = math.exp %36 : vector<2x8xf32>
    %cst_17 = arith.constant 1.000000e+00 : f32
    %48 = vector.broadcast %cst_17 : f32 to vector<2x8xf32>
    %49 = arith.subf %47, %48 : vector<2x8xf32>
    %cst_18 = arith.constant 0.000000e+00 : f32
    %cst_19 = arith.constant 7.500000e+01 : f32
    %50 = vector.broadcast %cst_18 : f32 to vector<2x8xf32>
    %51 = arith.maximumf %50, %49 : vector<2x8xf32>
    %52 = vector.broadcast %cst_19 : f32 to vector<2x8xf32>
    %53 = arith.minimumf %52, %51 : vector<2x8xf32>
    %54 = arith.mulf %53, %4 : vector<2x8xf32>
    %c0_20 = arith.constant 0 : index
    %c0_21 = arith.constant 0 : index
    %c0_22 = arith.constant 0 : index
    %55 = vector.load %arg6[%c0_20, %c0_21, %c0_22] : memref<2x8x32xf32, #tpu.memory_space<vmem>>, vector<2x8x32xf32>
    tpu.vector_store %arg6[%c0_20, %c0_21, %c0_22], %26 {strides = array<i32>} : memref<2x8x32xf32, #tpu.memory_space<vmem>>, vector<2x8x32xf32>,
    %c0_23 = arith.constant 0 : index
    %c0_24 = arith.constant 0 : index
    %c0_25 = arith.constant 0 : index
    %56 = vector.load %arg7[%c0_23, %c0_24, %c0_25] : memref<3x2x8xf32, #tpu.memory_space<vmem>>, vector<1x2x8xf32>
    %57 = vector.shape_cast %56 : vector<1x2x8xf32> to vector<2x8xf32>
    %58 = vector.shape_cast %36 : vector<2x8xf32> to vector<1x2x8xf32>
    tpu.vector_store %arg7[%c0_23, %c0_24, %c0_25], %58 {strides = array<i32>} : memref<3x2x8xf32, #tpu.memory_space<vmem>>, vector<1x2x8xf32>,
    %c1_26 = arith.constant 1 : index
    %c0_27 = arith.constant 0 : index
    %c0_28 = arith.constant 0 : index
    %59 = vector.load %arg7[%c1_26, %c0_27, %c0_28] : memref<3x2x8xf32, #tpu.memory_space<vmem>>, vector<1x2x8xf32>
    %60 = vector.shape_cast %59 : vector<1x2x8xf32> to vector<2x8xf32>
    %61 = vector.shape_cast %54 : vector<2x8xf32> to vector<1x2x8xf32>
    tpu.vector_store %arg7[%c1_26, %c0_27, %c0_28], %61 {strides = array<i32>} : memref<3x2x8xf32, #tpu.memory_space<vmem>>, vector<1x2x8xf32>,
    %c2 = arith.constant 2 : index
    %c0_29 = arith.constant 0 : index
    %c0_30 = arith.constant 0 : index
    %62 = vector.load %arg7[%c2, %c0_29, %c0_30] : memref<3x2x8xf32, #tpu.memory_space<vmem>>, vector<1x2x8xf32>
    %63 = vector.shape_cast %62 : vector<1x2x8xf32> to vector<2x8xf32>
    %64 = vector.shape_cast %46 : vector<2x8xf32> to vector<1x2x8xf32>
    tpu.vector_store %arg7[%c2, %c0_29, %c0_30], %64 {strides = array<i32>} : memref<3x2x8xf32, #tpu.memory_space<vmem>>, vector<1x2x8xf32>,
    return
  }
}

</mosaic_0001>

<llo_original>
// kernel: tpu_custom_call.1
$region0: #{tpu_custom_call.1}
  #allocation0 [shape = 'u32[]', space=smem, size = 0x4, offset = 0x4, fixed_abs, tag = 'smem constant byte address 0x4 - core index']
  #allocation1 [shape = 'u32[144,128]{1,0:T(1,128)}', space=vmem, size = 0x12000, scoped, tag = 'internal scratch']
  %s0 = inlined_call_operand.vmem [shape: s32[2,8], index: 0, kind: input, shape index: {}]
  %s1 = inlined_call_operand.vmem [shape: f32[40,32], index: 1, kind: input, shape index: {}]
  %s2 = inlined_call_operand.vmem [shape: f32[32,32], index: 2, kind: input, shape index: {}]
  %s3 = inlined_call_operand.vmem [shape: f32[1,32], index: 3, kind: input, shape index: {}]
  %s4 = inlined_call_operand.vmem [shape: f32[3,32], index: 4, kind: input, shape index: {}]
  %s5 = inlined_call_operand.vmem [shape: f32[3,1], index: 5, kind: input, shape index: {}]
  %s6 = inlined_call_operand.hbm [shape: f32[2,8,32], index: 6, kind: output, shape index: {0}]
  %s7 = inlined_call_operand.hbm [shape: f32[3,2,8], index: 7, kind: output, shape index: {1}]
  %8 = xla_tuple %s6, %s7
  %s9 = sld [smem:[#allocation0]]
  $region42: #{tpu_custom_call.1} parent=0
    _
  %s11 = ssub.s32 1, %s9
  %s12 = scalar_select 0, %s11, %s9
  $region1: #{tpu_custom_call.1} parent=0
    #allocation2 [shape = 'u8[8192]{0}', space=vmem, size = 0x2000, scoped, tag = 'output window, operand 0, single buffered']
    #allocation3 [shape = 's32[1]{0}', space=sflag, size = 0x4, scoped, tag = 'scoped memory for tpu_custom_call.1']
    #allocation4 [shape = 'u8[3072]{0}', space=vmem, size = 0xc00, scoped, tag = 'output window, operand 1, single buffered']
    #allocation5 [shape = 's32[1]{0}', space=sflag, size = 0x4, scoped, tag = 'scoped memory for tpu_custom_call.1']
    %13 = vsyncpa [#allocation3], 0
    %14 = vsyncpa [#allocation5], 0
    // Predicated region
    $region2: #{tpu_custom_call.1} parent=1 // pred_check
      _
    $region3: #{tpu_custom_call.1} parent=1 // pred_check_branch
      %16 = sbr.rel (0) target = $region5
    $region4: #{tpu_custom_call.1} parent=1 // pred_region
      _
    $region5: #{tpu_custom_call.1} parent=1 // pred_fallthru
      _
    // Predicated region
    $region6: #{tpu_custom_call.1} parent=1 // pred_check
      _
    $region7: #{tpu_custom_call.1} parent=1 // pred_check_branch
      %18 = sbr.rel (0) target = $region9
    $region8: #{tpu_custom_call.1} parent=1 // pred_region
      _
    $region9: #{tpu_custom_call.1} parent=1 // pred_fallthru
      _
    // Predicated region
    $region10: #{tpu_custom_call.1} parent=1 // pred_check
      _
    $region11: #{tpu_custom_call.1} parent=1 // pred_check_branch
      %20 = sbr.rel (0) target = $region13
    $region12: #{tpu_custom_call.1} parent=1 // pred_region
      _
    $region13: #{tpu_custom_call.1} parent=1 // pred_fallthru
      _
    // Predicated region
    $region14: #{tpu_custom_call.1} parent=1 // pred_check
      _
    $region15: #{tpu_custom_call.1} parent=1 // pred_check_branch
      %22 = sbr.rel (0) target = $region17
    $region16: #{tpu_custom_call.1} parent=1 // pred_region
      _
    $region17: #{tpu_custom_call.1} parent=1 // pred_fallthru
      _
    // Predicated region
    $region18: #{tpu_custom_call.1} parent=1 // pred_check
      _
    $region19: #{tpu_custom_call.1} parent=1 // pred_check_branch
      %24 = sbr.rel (0) target = $region21
    $region20: #{tpu_custom_call.1} parent=1 // pred_region
      _
    $region21: #{tpu_custom_call.1} parent=1 // pred_fallthru
      _
    // Predicated region
    $region22: #{tpu_custom_call.1} parent=1 // pred_check
      _
    $region23: #{tpu_custom_call.1} parent=1 // pred_check_branch
      %26 = sbr.rel (0) target = $region25
    $region24: #{tpu_custom_call.1} parent=1 // pred_region
      _
    $region25: #{tpu_custom_call.1} parent=1 // pred_fallthru
      _
    %v27 = vld [vmem:[%s0] sm:$0x3]
    %vm28 = vcmp.ne.s32.totalorder %v27, 0
    %v29 = vsel %vm28, 1, 0
    %v30 = vcvt.s32.f32 %v29
    %v31 = vlaneseq
    %v32 = vshrl.u32 %v31, 7
    %v33 = vsub.s32 0, %v32
    %v34 = vrot.slane %v27, %v33
    %36 = vbcast.lane.b32.xlu0 %v34, 256
    %v37 = vpop.permute.xlu0 %36
    %v38 = vlaneseq
    %v39 = vshrl.u32 %v38, 7
    %v40 = vsub.s32 1, %v39
    %v41 = vrot.slane %v27, %v40
    %43 = vbcast.lane.b32.xlu0 %v41, 256
    %v44 = vpop.permute.xlu0 %43
    %v45 = vlaneseq
    %v46 = vand.u32 %v45, 127
    %vm47 = vcmp.eq.s32.totalorder %v37, %v46
    %vm48 = vcmp.eq.s32.totalorder %v44, %v46
    %v49 = vsel %vm47, 1, 0
    %v50 = vsel %vm48, 1, 0
    %v51 = vcvt.s32.f32 %v49
    %v52 = vcvt.s32.f32 %v50
    %v53 = vld [vmem:[%s1] sm:$0xff]
    %v54 = vld [vmem:[%s1 + $0x8] sm:$0xff]
    %v55 = vld [vmem:[%s1 + $0x10] sm:$0xff]
    %v56 = vld [vmem:[%s1 + $0x18] sm:$0xff]
    %v57 = vld [vmem:[%s1 + $0x20] sm:$0xff]
    %vm58 = vcmask 326656
    %v60 = vsel %vm58, %v51, 0
    %62 = vmatprep.subr.mxu0 0.0
    %63 = vmatpush1.msra.mxu0 %v53
    %64 = vmatprep.subr.mxu0 0.0
    %65 = vmatpush1.msra.mxu0 %v54
    %66 = vmatprep.subr.mxu0 0.0
    %67 = vmatpush1.msra.mxu0 %v55
    %68 = vmatprep.subr.mxu0 0.0
    %69 = vmatpush1.msra.mxu0 %v56
    %70 = vmatprep.subr.mxu0 0.0
    %71 = vmatpush1.msra.mxu0 %v57
    %72 = vmatprep.subr.mxu0 0.0
    %73 = vmatpush1.msra.mxu0 0.0
    %74 = vmatprep.subr.mxu0 0.0
    %75 = vmatpush1.msra.mxu0 0.0
    %76 = vmatprep.subr.mxu0 0.0
    %77 = vmatpush1.msra.mxu0 0.0
    %78 = vmatprep.subr.mxu0 0.0
    %79 = vmatpush1.msra.mxu0 0.0
    %80 = vmatprep.subr.mxu0 0.0
    %81 = vmatpush1.msra.mxu0 0.0
    %82 = vmatprep.subr.mxu0 0.0
    %83 = vmatpush1.msra.mxu0 0.0
    %84 = vmatprep.subr.mxu0 0.0
    %85 = vmatpush1.msra.mxu0 0.0
    %86 = vmatprep.subr.mxu0 0.0
    %87 = vmatpush1.msra.mxu0 0.0
    %88 = vmatprep.subr.mxu0 0.0
    %89 = vmatpush1.msra.mxu0 0.0
    %90 = vmatprep.subr.mxu0 0.0
    %91 = vmatpush1.msra.mxu0 0.0
    %92 = vmatprep.subr.mxu0 0.0
    %93 = vmatpush1.msra.mxu0 0.0
    %94 = vmatprep.subr.mxu0 0.0
    %95 = vmatpush1.msra.mxu0 0.0
    %96 = vmatprep.subr.mxu0 0.0
    %97 = vmatpush1.msra.mxu0 0.0
    %98 = vmatprep.subr.mxu0 0.0
    %99 = vmatpush1.msra.mxu0 0.0
    %100 = vmatprep.subr.mxu0 0.0
    %101 = vmatpush1.msra.mxu0 0.0
    %102 = vmatprep.subr.mxu0 0.0
    %103 = vmatpush1.msra.mxu0 0.0
    %104 = vmatprep.subr.mxu0 0.0
    %105 = vmatpush1.msra.mxu0 0.0
    %106 = vmatprep.subr.mxu0 0.0
    %107 = vmatpush1.msra.mxu0 0.0
    %108 = vmatprep.subr.mxu0 0.0
    %109 = vmatpush1.msra.mxu0 0.0
    %110 = vmatprep.subr.mxu0 0.0
    %111 = vmatpush1.msra.mxu0 0.0
    %112 = vmatprep.subr.mxu0 0.0
    %113 = vmatpush1.msra.mxu0 0.0
    %114 = vmatprep.subr.mxu0 0.0
    %115 = vmatpush1.msra.mxu0 0.0
    %116 = vmatprep.subr.mxu0 0.0
    %117 = vmatpush1.msra.mxu0 0.0
    %118 = vmatprep.subr.mxu0 0.0
    %119 = vmatpush1.msra.mxu0 0.0
    %120 = vmatprep.subr.mxu0 0.0
    %121 = vmatpush1.msra.mxu0 0.0
    %122 = vmatprep.subr.mxu0 0.0
    %123 = vmatpush1.msra.mxu0 0.0
    %124 = vmatprep.subr.mxu0 0.0
    %125 = vmatpush1.msra.mxu0 0.0
    %126 = vmatprep.mubr.f32.mxu0 0.0
    %127 = vmatmul.mubr.f32.gmra.mrb[0].mxu0 %v60
    %v128 = vpop.f32.mrb[0].mxu0
    %v129 = vadd.f32 0.0, %v128
    %v130 = vpop.f32.mrb[0].mxu0
    %131 = vdwg.mxu0
    %v133 = vsel %vm58, %v52, 0
    %135 = vmatprep.subr.mxu0 0.0
    %136 = vmatpush1.msra.mxu0 %v53
    %137 = vmatprep.subr.mxu0 0.0
    %138 = vmatpush1.msra.mxu0 %v54
    %139 = vmatprep.subr.mxu0 0.0
    %140 = vmatpush1.msra.mxu0 %v55
    %141 = vmatprep.subr.mxu0 0.0
    %142 = vmatpush1.msra.mxu0 %v56
    %143 = vmatprep.subr.mxu0 0.0
    %144 = vmatpush1.msra.mxu0 %v57
    %145 = vmatprep.subr.mxu0 0.0
    %146 = vmatpush1.msra.mxu0 0.0
    %147 = vmatprep.subr.mxu0 0.0
    %148 = vmatpush1.msra.mxu0 0.0
    %149 = vmatprep.subr.mxu0 0.0
    %150 = vmatpush1.msra.mxu0 0.0
    %151 = vmatprep.subr.mxu0 0.0
    %152 = vmatpush1.msra.mxu0 0.0
    %153 = vmatprep.subr.mxu0 0.0
    %154 = vmatpush1.msra.mxu0 0.0
    %155 = vmatprep.subr.mxu0 0.0
    %156 = vmatpush1.msra.mxu0 0.0
    %157 = vmatprep.subr.mxu0 0.0
    %158 = vmatpush1.msra.mxu0 0.0
    %159 = vmatprep.subr.mxu0 0.0
    %160 = vmatpush1.msra.mxu0 0.0
    %161 = vmatprep.subr.mxu0 0.0
    %162 = vmatpush1.msra.mxu0 0.0
    %163 = vmatprep.subr.mxu0 0.0
    %164 = vmatpush1.msra.mxu0 0.0
    %165 = vmatprep.subr.mxu0 0.0
    %166 = vmatpush1.msra.mxu0 0.0
    %167 = vmatprep.subr.mxu0 0.0
    %168 = vmatpush1.msra.mxu0 0.0
    %169 = vmatprep.subr.mxu0 0.0
    %170 = vmatpush1.msra.mxu0 0.0
    %171 = vmatprep.subr.mxu0 0.0
    %172 = vmatpush1.msra.mxu0 0.0
    %173 = vmatprep.subr.mxu0 0.0
    %174 = vmatpush1.msra.mxu0 0.0
    %175 = vmatprep.subr.mxu0 0.0
    %176 = vmatpush1.msra.mxu0 0.0
    %177 = vmatprep.subr.mxu0 0.0
    %178 = vmatpush1.msra.mxu0 0.0
    %179 = vmatprep.subr.mxu0 0.0
    %180 = vmatpush1.msra.mxu0 0.0
    %181 = vmatprep.subr.mxu0 0.0
    %182 = vmatpush1.msra.mxu0 0.0
    %183 = vmatprep.subr.mxu0 0.0
    %184 = vmatpush1.msra.mxu0 0.0
    %185 = vmatprep.subr.mxu0 0.0
    %186 = vmatpush1.msra.mxu0 0.0
    %187 = vmatprep.subr.mxu0 0.0
    %188 = vmatpush1.msra.mxu0 0.0
    %189 = vmatprep.subr.mxu0 0.0
    %190 = vmatpush1.msra.mxu0 0.0
    %191 = vmatprep.subr.mxu0 0.0
    %192 = vmatpush1.msra.mxu0 0.0
    %193 = vmatprep.subr.mxu0 0.0
    %194 = vmatpush1.msra.mxu0 0.0
    %195 = vmatprep.subr.mxu0 0.0
    %196 = vmatpush1.msra.mxu0 0.0
    %197 = vmatprep.subr.mxu0 0.0
    %198 = vmatpush1.msra.mxu0 0.0
    %199 = vmatprep.mubr.f32.mxu0 0.0
    %200 = vmatmul.mubr.f32.gmra.mrb[0].mxu0 %v133
    %v201 = vpop.f32.mrb[0].mxu0
    %v202 = vadd.f32 0.0, %v201
    %v203 = vpop.f32.mrb[0].mxu0
    %204 = vdwg.mxu0
    %v205 = vld [vmem:[%s2] sm:$0xff]
    %v206 = vld [vmem:[%s2 + $0x8] sm:$0xff]
    %v207 = vld [vmem:[%s2 + $0x10] sm:$0xff]
    %v208 = vld [vmem:[%s2 + $0x18] sm:$0xff]
    %v209 = vld [vmem:[%s3] sm:$0x1]
    %v211 = vlaneseq
    %v212 = vshrl.u32 %v211, 7
    %v213 = vsub.s32 0, %v212
    %v214 = vrot.slane %v209, %v213
    %vm216 = vcmask 261120
    %v218 = vsel %vm216, %v129, 0
    %220 = vmatprep.subr.mxu0 0.0
    %221 = vmatpush1.msra.mxu0 %v205
    %222 = vmatprep.subr.mxu0 0.0
    %223 = vmatpush1.msra.mxu0 %v206
    %224 = vmatprep.subr.mxu0 0.0
    %225 = vmatpush1.msra.mxu0 %v207
    %226 = vmatprep.subr.mxu0 0.0
    %227 = vmatpush1.msra.mxu0 %v208
    %228 = vmatprep.subr.mxu0 0.0
    %229 = vmatpush1.msra.mxu0 0.0
    %230 = vmatprep.subr.mxu0 0.0
    %231 = vmatpush1.msra.mxu0 0.0
    %232 = vmatprep.subr.mxu0 0.0
    %233 = vmatpush1.msra.mxu0 0.0
    %234 = vmatprep.subr.mxu0 0.0
    %235 = vmatpush1.msra.mxu0 0.0
    %236 = vmatprep.subr.mxu0 0.0
    %237 = vmatpush1.msra.mxu0 0.0
    %238 = vmatprep.subr.mxu0 0.0
    %239 = vmatpush1.msra.mxu0 0.0
    %240 = vmatprep.subr.mxu0 0.0
    %241 = vmatpush1.msra.mxu0 0.0
    %242 = vmatprep.subr.mxu0 0.0
    %243 = vmatpush1.msra.mxu0 0.0
    %244 = vmatprep.subr.mxu0 0.0
    %245 = vmatpush1.msra.mxu0 0.0
    %246 = vmatprep.subr.mxu0 0.0
    %247 = vmatpush1.msra.mxu0 0.0
    %248 = vmatprep.subr.mxu0 0.0
    %249 = vmatpush1.msra.mxu0 0.0
    %250 = vmatprep.subr.mxu0 0.0
    %251 = vmatpush1.msra.mxu0 0.0
    %252 = vmatprep.subr.mxu0 0.0
    %253 = vmatpush1.msra.mxu0 0.0
    %254 = vmatprep.subr.mxu0 0.0
    %255 = vmatpush1.msra.mxu0 0.0
    %256 = vmatprep.subr.mxu0 0.0
    %257 = vmatpush1.msra.mxu0 0.0
    %258 = vmatprep.subr.mxu0 0.0
    %259 = vmatpush1.msra.mxu0 0.0
    %260 = vmatprep.subr.mxu0 0.0
    %261 = vmatpush1.msra.mxu0 0.0
    %262 = vmatprep.subr.mxu0 0.0
    %263 = vmatpush1.msra.mxu0 0.0
    %264 = vmatprep.subr.mxu0 0.0
    %265 = vmatpush1.msra.mxu0 0.0
    %266 = vmatprep.subr.mxu0 0.0
    %267 = vmatpush1.msra.mxu0 0.0
    %268 = vmatprep.subr.mxu0 0.0
    %269 = vmatpush1.msra.mxu0 0.0
    %270 = vmatprep.subr.mxu0 0.0
    %271 = vmatpush1.msra.mxu0 0.0
    %272 = vmatprep.subr.mxu0 0.0
    %273 = vmatpush1.msra.mxu0 0.0
    %274 = vmatprep.subr.mxu0 0.0
    %275 = vmatpush1.msra.mxu0 0.0
    %276 = vmatprep.subr.mxu0 0.0
    %277 = vmatpush1.msra.mxu0 0.0
    %278 = vmatprep.subr.mxu0 0.0
    %279 = vmatpush1.msra.mxu0 0.0
    %280 = vmatprep.subr.mxu0 0.0
    %281 = vmatpush1.msra.mxu0 0.0
    %282 = vmatprep.subr.mxu0 0.0
    %283 = vmatpush1.msra.mxu0 0.0
    %284 = vmatprep.mubr.f32.mxu0 0.0
    %285 = vmatmul.mubr.f32.gmra.mrb[0].mxu0 %v218
    %v286 = vpop.f32.mrb[0].mxu0
    %v287 = vadd.f32 %v214, %v286
    %v288 = vpop.f32.mrb[0].mxu0
    %289 = vdwg.mxu0
    %v291 = vsel %vm216, %v202, 0
    %293 = vmatprep.subr.mxu0 0.0
    %294 = vmatpush1.msra.mxu0 %v205
    %295 = vmatprep.subr.mxu0 0.0
    %296 = vmatpush1.msra.mxu0 %v206
    %297 = vmatprep.subr.mxu0 0.0
    %298 = vmatpush1.msra.mxu0 %v207
    %299 = vmatprep.subr.mxu0 0.0
    %300 = vmatpush1.msra.mxu0 %v208
    %301 = vmatprep.subr.mxu0 0.0
    %302 = vmatpush1.msra.mxu0 0.0
    %303 = vmatprep.subr.mxu0 0.0
    %304 = vmatpush1.msra.mxu0 0.0
    %305 = vmatprep.subr.mxu0 0.0
    %306 = vmatpush1.msra.mxu0 0.0
    %307 = vmatprep.subr.mxu0 0.0
    %308 = vmatpush1.msra.mxu0 0.0
    %309 = vmatprep.subr.mxu0 0.0
    %310 = vmatpush1.msra.mxu0 0.0
    %311 = vmatprep.subr.mxu0 0.0
    %312 = vmatpush1.msra.mxu0 0.0
    %313 = vmatprep.subr.mxu0 0.0
    %314 = vmatpush1.msra.mxu0 0.0
    %315 = vmatprep.subr.mxu0 0.0
    %316 = vmatpush1.msra.mxu0 0.0
    %317 = vmatprep.subr.mxu0 0.0
    %318 = vmatpush1.msra.mxu0 0.0
    %319 = vmatprep.subr.mxu0 0.0
    %320 = vmatpush1.msra.mxu0 0.0
    %321 = vmatprep.subr.mxu0 0.0
    %322 = vmatpush1.msra.mxu0 0.0
    %323 = vmatprep.subr.mxu0 0.0
    %324 = vmatpush1.msra.mxu0 0.0
    %325 = vmatprep.subr.mxu0 0.0
    %326 = vmatpush1.msra.mxu0 0.0
    %327 = vmatprep.subr.mxu0 0.0
    %328 = vmatpush1.msra.mxu0 0.0
    %329 = vmatprep.subr.mxu0 0.0
    %330 = vmatpush1.msra.mxu0 0.0
    %331 = vmatprep.subr.mxu0 0.0
    %332 = vmatpush1.msra.mxu0 0.0
    %333 = vmatprep.subr.mxu0 0.0
    %334 = vmatpush1.msra.mxu0 0.0
    %335 = vmatprep.subr.mxu0 0.0
    %336 = vmatpush1.msra.mxu0 0.0
    %337 = vmatprep.subr.mxu0 0.0
    %338 = vmatpush1.msra.mxu0 0.0
    %339 = vmatprep.subr.mxu0 0.0
    %340 = vmatpush1.msra.mxu0 0.0
    %341 = vmatprep.subr.mxu0 0.0
    %342 = vmatpush1.msra.mxu0 0.0
    %343 = vmatprep.subr.mxu0 0.0
    %344 = vmatpush1.msra.mxu0 0.0
    %345 = vmatprep.subr.mxu0 0.0
    %346 = vmatpush1.msra.mxu0 0.0
    %347 = vmatprep.subr.mxu0 0.0
    %348 = vmatpush1.msra.mxu0 0.0
    %349 = vmatprep.subr.mxu0 0.0
    %350 = vmatpush1.msra.mxu0 0.0
    %351 = vmatprep.subr.mxu0 0.0
    %352 = vmatpush1.msra.mxu0 0.0
    %353 = vmatprep.subr.mxu0 0.0
    %354 = vmatpush1.msra.mxu0 0.0
    %355 = vmatprep.subr.mxu0 0.0
    %356 = vmatpush1.msra.mxu0 0.0
    %357 = vmatprep.mubr.f32.mxu0 0.0
    %358 = vmatmul.mubr.f32.gmra.mrb[0].mxu0 %v291
    %v359 = vpop.f32.mrb[0].mxu0
    %v360 = vadd.f32 %v214, %v359
    %v361 = vpop.f32.mrb[0].mxu0
    %362 = vdwg.mxu0
    %v363 = vtanh.pop %v287
    %v364 = vtanh.pop %v360
    %v365 = vlaneseq
    %v366 = vshrl.u32 %v365, 7
    %v367 = vsub.s32 0, %v366
    %v368 = vrot.slane %v30, %v367
    %370 = vbcast.lane.b32.xlu0 %v368, 256
    %v371 = vpop.permute.xlu0 %370
    %v372 = vlaneseq
    %v373 = vshrl.u32 %v372, 7
    %v374 = vsub.s32 1, %v373
    %v375 = vrot.slane %v30, %v374
    %377 = vbcast.lane.b32.xlu0 %v375, 256
    %v378 = vpop.permute.xlu0 %377
    %v379 = vmul.f32 %v363, %v371
    %v380 = vmul.f32 %v364, %v378
    %v381 = vld [vmem:[%s4] sm:$0x1]
    %v382 = vlaneseq
    %v383 = vshrl.u32 %v382, 7
    %v384 = vsub.s32 0, %v383
    %v385 = vrot.slane %v381, %v384
    %v386 = vmul.f32 %v379, %v385
    %v387 = vmul.f32 %v380, %v385
    %v388 = vsel %vm216, %v386, 0.0
    %389 = vadd.xlane.f32.xlu0 %v388
    %v390 = vpop.xlane.xlu0 %389
    %v391 = vsel %vm216, %v387, 0.0
    %392 = vadd.xlane.f32.xlu0 %v391
    %v393 = vpop.xlane.xlu0 %392
    %v394 = vld [vmem:[%s5] sm:$0x1]
    %s395 = vtos %v394
    %v396 = vstv %s395
    %v397 = vadd.f32 %v390, %v396
    %v398 = vadd.f32 %v393, %v396
    %v400 = vlaneseq
    %v401 = vshrl.u32 %v400, 7
    %v402 = vsub.s32 0, %v401
    %v403 = vrot.slane %v30, %v402
    %405 = vbcast.lane.b32.xlu0 %v403, 256
    %v406 = vpop.permute.xlu0 %405
    %v407 = vlaneseq
    %v408 = vshrl.u32 %v407, 7
    %v409 = vsub.s32 1, %v408
    %v410 = vrot.slane %v30, %v409
    %412 = vbcast.lane.b32.xlu0 %v410, 256
    %v413 = vpop.permute.xlu0 %412
    %v416 = vmul.f32 %v397, %v406
    %v417 = vmul.f32 %v398, %v413
    %v418 = vld [vmem:[%s4 + $0x1] sm:$0x1]
    %v419 = vlaneseq
    %v420 = vshrl.u32 %v419, 7
    %v421 = vsub.s32 0, %v420
    %v422 = vrot.slane %v418, %v421
    %v423 = vmul.f32 %v379, %v422
    %v424 = vmul.f32 %v380, %v422
    %v425 = vsel %vm216, %v423, 0.0
    %426 = vadd.xlane.f32.xlu0 %v425
    %v427 = vpop.xlane.xlu0 %426
    %v428 = vsel %vm216, %v424, 0.0
    %429 = vadd.xlane.f32.xlu0 %v428
    %v430 = vpop.xlane.xlu0 %429
    %v431 = vld [vmem:[%s5 + $0x1] sm:$0x1]
    %s432 = vtos %v431
    %v433 = vstv %s432
    %v434 = vadd.f32 %v427, %v433
    %v435 = vadd.f32 %v430, %v433
    %v436 = vmul.f32 %v434, %v406
    %v437 = vmul.f32 %v435, %v413
    %v438 = vmul.f32 %v416, 1.442695
    %v439 = vpow.pop %v438
    %v440 = vmul.f32 %v417, 1.442695
    %v441 = vpow.pop %v440
    %v442 = vsub.f32 %v439, 1.0
    %v443 = vsub.f32 %v441, 1.0
    %v444 = vmax.f32 %v442, 0.0
    %v445 = vmax.f32 %v443, 0.0
    %v446 = vmin.f32 %v444, 75.0
    %v447 = vmin.f32 %v445, 75.0
    %v448 = vmul.f32 %v446, %v406
    %v449 = vmul.f32 %v447, %v413
    %450 = vst.msk [vmem:[#allocation2] sm:$0xff] %vm216, %v379
    %451 = vst.msk [vmem:[#allocation2 + $0x8] sm:$0xff] %vm216, %v380
    %454 = vset.pattern.permute.xlu0 0
    %455 = vperm.xlu0 %454, %v416
    %v456 = vpop.permute.xlu0 %455
    %457 = vset.pattern.permute.xlu0 0
    %458 = vperm.xlu0 %457, %v417
    %v459 = vpop.permute.xlu0 %458
    %v460 = vlaneseq
    %v461 = vshrl.u32 %v460, 7
    %v462 = vsub.s32 %v46, %v461
    %v463 = vrot.slane %v456, %v462
    %v464 = vlaneseq
    %v465 = vshrl.u32 %v464, 7
    %v466 = vsub.s32 %v46, %v465
    %v467 = vrot.slane %v459, %v466
    %vm468 = vcmask 1041409
    %v469 = vsel %vm468, %v467, %v463
    %vm471 = vcmask 58368
    %472 = vst.msk [vmem:[#allocation4] sm:$0x3] %vm471, %v469
    %475 = vset.pattern.permute.xlu0 0
    %476 = vperm.xlu0 %475, %v448
    %v477 = vpop.permute.xlu0 %476
    %478 = vset.pattern.permute.xlu0 0
    %479 = vperm.xlu0 %478, %v449
    %v480 = vpop.permute.xlu0 %479
    %v481 = vlaneseq
    %v482 = vshrl.u32 %v481, 7
    %v483 = vsub.s32 %v46, %v482
    %v484 = vrot.slane %v477, %v483
    %v485 = vlaneseq
    %v486 = vshrl.u32 %v485, 7
    %v487 = vsub.s32 %v46, %v486
    %v488 = vrot.slane %v480, %v487
    %v489 = vsel %vm468, %v488, %v484
    %s491 = scalar_lea.vmem [#allocation4], 2
    %492 = vst.msk [vmem:[%s491] sm:$0x3] %vm471, %v489
    %495 = vset.pattern.permute.xlu0 0
    %496 = vperm.xlu0 %495, %v436
    %v497 = vpop.permute.xlu0 %496
    %498 = vset.pattern.permute.xlu0 0
    %499 = vperm.xlu0 %498, %v437
    %v500 = vpop.permute.xlu0 %499
    %v501 = vlaneseq
    %v502 = vshrl.u32 %v501, 7
    %v503 = vsub.s32 %v46, %v502
    %v504 = vrot.slane %v497, %v503
    %v505 = vlaneseq
    %v506 = vshrl.u32 %v505, 7
    %v507 = vsub.s32 %v46, %v506
    %v508 = vrot.slane %v500, %v507
    %v509 = vsel %vm468, %v508, %v504
    %s511 = scalar_lea.vmem [#allocation4], 4
    %512 = vst.msk [vmem:[%s511] sm:$0x3] %vm471, %v509
    // Predicated region
    $region26: #{tpu_custom_call.1} parent=1 // pred_check
      _
    $region27: #{tpu_custom_call.1} parent=1 // pred_check_branch
      %514 = sbr.rel (0) target = $region29
    $region28: #{tpu_custom_call.1} parent=1 // pred_region
      %s516 = ssub.s32 256, 256
      %517 = vsyncadd [#allocation3], %s516
      %s518 = sshll.u32 [#allocation2], 4
      %s519 = int_to_ptr.vmem [resolvable:$true] %s518
      %524 = dma.vmem_to_hbm [thread:$0]  %s519, 256, %s6, [#allocation3], 128, 128, 8
    $region29: #{tpu_custom_call.1} parent=1 // pred_fallthru
      _
    // Predicated region
    $region30: #{tpu_custom_call.1} parent=1 // pred_check
      _
    $region31: #{tpu_custom_call.1} parent=1 // pred_check_branch
      %526 = sbr.rel (0) target = $region33
    $region32: #{tpu_custom_call.1} parent=1 // pred_region
      %s528 = ssub.s32 96, 96
      %529 = vsyncadd [#allocation5], %s528
      %s530 = sshll.u32 [#allocation4], 4
      %s531 = int_to_ptr.vmem [resolvable:$true] %s530
      %536 = dma.vmem_to_hbm [thread:$0]  %s531, 96, %s7, [#allocation5], 32, 32, 2
    $region33: #{tpu_custom_call.1} parent=1 // pred_fallthru
      _
    // Predicated region
    $region34: #{tpu_custom_call.1} parent=1 // pred_check
      _
    $region35: #{tpu_custom_call.1} parent=1 // pred_check_branch
      %538 = sbr.rel (0) target = $region37
    $region36: #{tpu_custom_call.1} parent=1 // pred_region
      %539 = dma.done [#allocation3], 256
    $region37: #{tpu_custom_call.1} parent=1 // pred_fallthru
      _
    // Predicated region
    $region38: #{tpu_custom_call.1} parent=1 // pred_check
      _
    $region39: #{tpu_custom_call.1} parent=1 // pred_check_branch
      %541 = sbr.rel (0) target = $region41
    $region40: #{tpu_custom_call.1} parent=1 // pred_region
      %542 = dma.done [#allocation5], 96
    $region41: #{tpu_custom_call.1} parent=1 // pred_fallthru
      _
    %543 = vsyncpa [#allocation3], 1
    %544 = vsyncpa [#allocation5], 1

</llo_original>
